<compile_context>
chip_gen: v7x
topology: tpu7x:2x2x1
jax: 0.10.0
libtpu: 0.0.40
codegen_flags: <defaults>
</compile_context>

<pallas_src>
import functools

import jax
import jax.numpy as jnp
from jax.experimental import pallas as pl
from jax.experimental.pallas import tpu as pltpu


_INV_SQRT2 = 0.7071067811865476


def _gelu_exact(x):
    # torch.nn.GELU() default is the exact (erf-based) GELU.
    return 0.5 * x * (1.0 + jax.lax.erf(x * _INV_SQRT2))


def _round_up(x, n):
    return ((x + n - 1) // n) * n


def _pick_tn(dout_pad, max_tn=512):
    """Largest lane-dense (multiple-of-128) column tile that divides dout_pad."""
    for cand in (512, 384, 256, 128):
        if cand <= max_tn and dout_pad % cand == 0:
            return cand
    return 128


def _vmem_capacity_bytes():
    try:
        return int(pltpu.get_tpu_info().vmem_capacity_bytes)
    except Exception:
        return 64 << 20  # conservative fallback: v7x per-TensorCore VMEM


def _mlp_kernel(x_ref, w1_ref, b1_ref, w2_ref, b2_ref, o_ref, h_ref):
    # x_ref:  (tm, Din)   w1_ref: (Din, H)   b1_ref: (1, H)
    # w2_ref: (H, tn)     b2_ref: (1, tn)    o_ref:  (tm, tn)
    # h_ref:  (tm, H) VMEM scratch carrying GELU(x @ w1 + b1) across Dout tiles.
    @pl.when(pl.program_id(1) == 0)
    def _():
        h = jnp.dot(x_ref[...], w1_ref[...], preferred_element_type=jnp.float32)
        h = h + b1_ref[...].astype(jnp.float32)
        h_ref[...] = _gelu_exact(h).astype(h_ref.dtype)

    out = jnp.dot(h_ref[...], w2_ref[...], preferred_element_type=jnp.float32)
    out = out + b2_ref[...].astype(jnp.float32)
    o_ref[...] = out.astype(o_ref.dtype)


@functools.partial(jax.jit, static_argnames=("tm", "tn"))
def projection_layer_forward(x, w1, b1, w2, b2, *, tm=256, tn=None):
    """x: (..., Din). w1: (Din, H), b1: (H,), w2: (H, Dout), b2: (Dout,)."""
    din = x.shape[-1]
    hdim = w1.shape[1]
    dout = w2.shape[1]
    lead_shape = x.shape[:-1]

    x2d = x.reshape(-1, din)
    m = x2d.shape[0]

    # --- Pad Dout to a multiple of 128 -> lane-dense, unmasked output stores.
    dout_pad = max(128, _round_up(dout, 128))
    if dout_pad != dout:
        w2 = jnp.pad(w2, ((0, 0), (0, dout_pad - dout)))
        b2 = jnp.pad(b2, ((0, dout_pad - dout),))

    tn_eff = _pick_tn(dout_pad) if tn is None else tn
    assert dout_pad % tn_eff == 0, "tn must divide the (padded) output dim"

    # --- Row tile: big (default 256), 8-aligned. No HBM pad/copy of x: the grid
    # is cdiv(M, tm); the ragged last tile's out-of-bounds rows are dropped on
    # the output write.
    tm_eff = max(8, min(_round_up(tm, 8), _round_up(m, 8)))
    # v7x megacore: make sure the "parallel" row axis has >= 2 tiles.
    while pl.cdiv(m, tm_eff) < 2 and tm_eff > 8:
        tm_eff = max(8, _round_up(tm_eff // 2, 8))

    x_it = jnp.dtype(x.dtype).itemsize
    w1_it = jnp.dtype(w1.dtype).itemsize
    w2_it = jnp.dtype(w2.dtype).itemsize
    o_it = x_it
    h_it = x_it  # hidden scratch kept in the activation dtype

    def working_set(tm_, tn_):
        return (2 * tm_ * din * x_it        # x tiles (double-buffered)
                + din * hdim * w1_it        # w1 (constant index, Buffered(1))
                + hdim * w1_it              # b1 (constant index, Buffered(1))
                + 2 * hdim * tn_ * w2_it    # w2 column tiles
                + 2 * tn_ * w2_it           # b2 column tiles
                + 2 * tm_ * tn_ * o_it      # out tiles
                + tm_ * hdim * h_it)        # hidden scratch (single buffer)

    cap = _vmem_capacity_bytes()
    budget = int(cap * 0.85)

    # Shrink tiles until the working set fits this chip's VMEM.
    while working_set(tm_eff, tn_eff) > budget and (tm_eff > 8 or tn_eff > 128):
        w2_cost = 2 * hdim * tn_eff * w2_it
        row_cost = tm_eff * (2 * din * x_it + hdim * h_it + 2 * tn_eff * o_it)
        if tn_eff > 128 and w2_cost >= row_cost:
            tn_eff = _pick_tn(dout_pad, max_tn=tn_eff - 1)
        elif tm_eff > 8:
            tm_eff = max(8, _round_up(tm_eff // 2, 8))
        else:
            tn_eff = _pick_tn(dout_pad, max_tn=tn_eff - 1)

    grid_i = pl.cdiv(m, tm_eff)
    grid = (grid_i, dout_pad // tn_eff)

    vmem_needed = working_set(tm_eff, tn_eff)
    vmem_limit = int(min(max(int(vmem_needed * 1.25) + (2 << 20), 16 << 20), budget))

    cost = pl.CostEstimate(
        flops=2 * m * (din * hdim + hdim * dout_pad),
        transcendentals=m * hdim,
        bytes_accessed=(m * din * x_it
                        + din * hdim * w1_it + hdim * w1_it          # w1/b1 once
                        + grid_i * (hdim * dout_pad * w2_it          # w2 per row tile
                                    + dout_pad * w2_it)
                        + m * dout_pad * o_it),
    )

    out2d = pl.pallas_call(
        _mlp_kernel,
        out_shape=jax.ShapeDtypeStruct((m, dout_pad), x.dtype),
        grid_spec=pltpu.PrefetchScalarGridSpec(
            num_scalar_prefetch=0,
            grid=grid,
            in_specs=[
                pl.BlockSpec((tm_eff, din), lambda i, j: (i, 0)),
                # Constant index maps: DMA'd once; single buffer halves their VMEM.
                pl.BlockSpec((din, hdim), lambda i, j: (0, 0),
                             pipeline_mode=pl.Buffered(1)),
                pl.BlockSpec((1, hdim), lambda i, j: (0, 0),
                             pipeline_mode=pl.Buffered(1)),
                pl.BlockSpec((hdim, tn_eff), lambda i, j: (0, j)),
                pl.BlockSpec((1, tn_eff), lambda i, j: (0, j)),
            ],
            out_specs=pl.BlockSpec((tm_eff, tn_eff), lambda i, j: (i, j)),
            scratch_shapes=[pltpu.VMEM((tm_eff, hdim), x.dtype)],
        ),
        compiler_params=pltpu.CompilerParams(
            dimension_semantics=("parallel", "arbitrary"),
            vmem_limit_bytes=vmem_limit,
        ),
        cost_estimate=cost,
    )(x2d, w1, b1.reshape(1, hdim), w2, b2.reshape(1, dout_pad))

    if dout_pad != dout:
        out2d = out2d[:, :dout]
    return out2d.reshape(*lead_shape, dout)


def init_params(key, input_dim, intermediate_dim, output_dim, dtype=jnp.float32):
    """Deterministic init matching the PyTorch module's __init__ semantics.

    kaiming_normal_(nonlinearity='relu')   -> std = sqrt(2 / fan_in)
    kaiming_normal_(nonlinearity='linear') -> std = sqrt(1 / fan_in)
    Biases are zero. Weights returned in (in, out) layout for the kernel.
    """
    k1, k2 = jax.random.split(key)
    std1 = (2.0 / input_dim) ** 0.5
    std2 = (1.0 / intermediate_dim) ** 0.5
    w1 = (jax.random.normal(k1, (input_dim, intermediate_dim), dtype=jnp.float32)
          * std1).astype(dtype)
    w2 = (jax.random.normal(k2, (intermediate_dim, output_dim), dtype=jnp.float32)
          * std2).astype(dtype)
    b1 = jnp.zeros((intermediate_dim,), dtype=dtype)
    b2 = jnp.zeros((output_dim,), dtype=dtype)
    return w1, b1, w2, b2


def _reference_forward(x, w1, b1, w2, b2):
    h = jnp.dot(x, w1, precision=jax.lax.Precision.HIGHEST) + b1
    h = _gelu_exact(h)
    return jnp.dot(h, w2, precision=jax.lax.Precision.HIGHEST) + b2


if __name__ == "__main__":
    # Small shapes consistent with the module (input_dim -> intermediate -> output).
    batch, seq = 2, 8
    input_dim, intermediate_dim, output_dim = 32, 64, 64

    key = jax.random.PRNGKey(0)
    kx, kp = jax.random.split(key)
    x = jax.random.normal(kx, (batch, seq, input_dim), dtype=jnp.float32)
    w1, b1, w2, b2 = init_params(kp, input_dim, intermediate_dim, output_dim)

    out = jax.block_until_ready(projection_layer_forward(x, w1, b1, w2, b2))
    ref = _reference_forward(x, w1, b1, w2, b2)
    assert out.shape == (batch, seq, output_dim)
    # Tolerance accounts for TPU MXU matmul pass precision vs the f32 XLA
    # reference; structural bugs produce O(1) errors and would still trip this.
    assert jnp.allclose(out, ref, atol=2e-2, rtol=1e-2), "mismatch vs JAX reference"

    # Ragged-M path (batch*seq not a row-tile multiple) + Dout-padding path.
    x2 = jax.random.normal(jax.random.PRNGKey(1), (3, 5, input_dim), dtype=jnp.float32)
    out2 = jax.block_until_ready(projection_layer_forward(x2, w1, b1, w2, b2))
    ref2 = _reference_forward(x2, w1, b1, w2, b2)
    assert out2.shape == (3, 5, output_dim)
    assert jnp.allclose(out2, ref2, atol=2e-2, rtol=1e-2), "ragged-M path mismatch"

    print("KERNEL_OK")
</pallas_src>

<mosaic_0001>
module attributes {stable_mosaic.version = 11 : i64} {
  func.func @_mlp_kernel(%arg0: i32, %arg1: i32, %arg2: memref<8x32xf32, #tpu.memory_space<vmem>>, %arg3: memref<32x64xf32, #tpu.memory_space<vmem>>, %arg4: memref<1x64xf32, #tpu.memory_space<vmem>>, %arg5: memref<64x128xf32, #tpu.memory_space<vmem>>, %arg6: memref<1x128xf32, #tpu.memory_space<vmem>>, %arg7: memref<8x128xf32, #tpu.memory_space<vmem>>, %arg8: memref<8x64xf32, #tpu.memory_space<vmem>>) attributes {dimension_semantics = [#tpu.dimension_semantics<parallel>, #tpu.dimension_semantics<arbitrary>], iteration_bounds = array<i64: 2, 1>, scalar_prefetch = 0 : i64, scratch_operands = 1 : i64, tpu.core_type = #tpu.core_type<tc>, window_params = [{transform_indices = @transform_0, window_bounds = array<i64: 8, 32>}, {pipeline_mode = #tpu.pipeline_mode<synchronous>, transform_indices = @transform_1, window_bounds = array<i64: 32, 64>}, {pipeline_mode = #tpu.pipeline_mode<synchronous>, transform_indices = @transform_2, window_bounds = array<i64: 1, 64>}, {transform_indices = @transform_3, window_bounds = array<i64: 64, 128>}, {transform_indices = @transform_4, window_bounds = array<i64: 1, 128>}, {transform_indices = @transform_5, window_bounds = array<i64: 8, 128>}]} {
    %c0_i32 = arith.constant 0 : i32
    %0 = arith.cmpi eq, %arg1, %c0_i32 : i32
    %1 = arith.extui %0 : i1 to i32
    %c0_i32_0 = arith.constant 0 : i32
    %2 = arith.cmpi ne, %1, %c0_i32_0 : i32
    scf.if %2 {
      %c0_8 = arith.constant 0 : index
      %c0_9 = arith.constant 0 : index
      %10 = vector.load %arg2[%c0_8, %c0_9] : memref<8x32xf32, #tpu.memory_space<vmem>>, vector<8x32xf32>
      %c0_10 = arith.constant 0 : index
      %c0_11 = arith.constant 0 : index
      %11 = vector.load %arg3[%c0_10, %c0_11] : memref<32x64xf32, #tpu.memory_space<vmem>>, vector<32x64xf32>
      %cst_12 = arith.constant dense<0.000000e+00> : vector<8x64xf32>
      %12 = tpu.matmul %10, %11, %cst_12 {dimension_numbers = #tpu.dot_dimension_numbers<[1], [0], [0], [1], [0, 0, 1, 1], [], []>} : vector<8x32xf32>, vector<32x64xf32>, vector<8x64xf32> -> vector<8x64xf32>
      %c0_13 = arith.constant 0 : index
      %c0_14 = arith.constant 0 : index
      %13 = vector.load %arg4[%c0_13, %c0_14] : memref<1x64xf32, #tpu.memory_space<vmem>>, vector<1x64xf32>
      %14 = vector.broadcast %13 : vector<1x64xf32> to vector<8x64xf32>
      %15 = arith.addf %12, %14 : vector<8x64xf32>
      %cst_15 = arith.constant 5.000000e-01 : f32
      %16 = vector.broadcast %cst_15 : f32 to vector<8x64xf32>
      %17 = arith.mulf %16, %15 : vector<8x64xf32>
      %cst_16 = arith.constant 0.707106769 : f32
      %18 = vector.broadcast %cst_16 : f32 to vector<8x64xf32>
      %19 = arith.mulf %15, %18 : vector<8x64xf32>
      %20 = math.erf %19 : vector<8x64xf32>
      %cst_17 = arith.constant 1.000000e+00 : f32
      %21 = vector.broadcast %cst_17 : f32 to vector<8x64xf32>
      %22 = arith.addf %21, %20 : vector<8x64xf32>
      %23 = arith.mulf %17, %22 : vector<8x64xf32>
      %c0_18 = arith.constant 0 : index
      %c0_19 = arith.constant 0 : index
      %24 = vector.load %arg8[%c0_18, %c0_19] : memref<8x64xf32, #tpu.memory_space<vmem>>, vector<8x64xf32>
      tpu.vector_store %arg8[%c0_18, %c0_19], %23 {strides = array<i32>} : memref<8x64xf32, #tpu.memory_space<vmem>>, vector<8x64xf32>,
    } else {
    }
    %c0 = arith.constant 0 : index
    %c0_1 = arith.constant 0 : index
    %3 = vector.load %arg8[%c0, %c0_1] : memref<8x64xf32, #tpu.memory_space<vmem>>, vector<8x64xf32>
    %c0_2 = arith.constant 0 : index
    %c0_3 = arith.constant 0 : index
    %4 = vector.load %arg5[%c0_2, %c0_3] : memref<64x128xf32, #tpu.memory_space<vmem>>, vector<64x128xf32>
    %cst = arith.constant dense<0.000000e+00> : vector<8x128xf32>
    %5 = tpu.matmul %3, %4, %cst {dimension_numbers = #tpu.dot_dimension_numbers<[1], [0], [0], [1], [0, 0, 1, 1], [], []>} : vector<8x64xf32>, vector<64x128xf32>, vector<8x128xf32> -> vector<8x128xf32>
    %c0_4 = arith.constant 0 : index
    %c0_5 = arith.constant 0 : index
    %6 = vector.load %arg6[%c0_4, %c0_5] : memref<1x128xf32, #tpu.memory_space<vmem>>, vector<1x128xf32>
    %7 = vector.broadcast %6 : vector<1x128xf32> to vector<8x128xf32>
    %8 = arith.addf %5, %7 : vector<8x128xf32>
    %c0_6 = arith.constant 0 : index
    %c0_7 = arith.constant 0 : index
    %9 = vector.load %arg7[%c0_6, %c0_7] : memref<8x128xf32, #tpu.memory_space<vmem>>, vector<8x128xf32>
    tpu.vector_store %arg7[%c0_6, %c0_7], %8 {strides = array<i32>} : memref<8x128xf32, #tpu.memory_space<vmem>>, vector<8x128xf32>,
    return
  }
  func.func @transform_0(%arg0: i32, %arg1: i32) -> (i32, i32) {
    %c0_i32 = arith.constant 0 : i32
    %c0_i32_0 = arith.constant 0 : i32
    return %arg0, %c0_i32 : i32, i32
  }
  func.func @transform_1(%arg0: i32, %arg1: i32) -> (i32, i32) {
    %c0_i32 = arith.constant 0 : i32
    %c0_i32_0 = arith.constant 0 : i32
    %c0_i32_1 = arith.constant 0 : i32
    return %c0_i32, %c0_i32_0 : i32, i32
  }
  func.func @transform_2(%arg0: i32, %arg1: i32) -> (i32, i32) {
    %c0_i32 = arith.constant 0 : i32
    %c0_i32_0 = arith.constant 0 : i32
    %c0_i32_1 = arith.constant 0 : i32
    return %c0_i32, %c0_i32_0 : i32, i32
  }
  func.func @transform_3(%arg0: i32, %arg1: i32) -> (i32, i32) {
    %c0_i32 = arith.constant 0 : i32
    %c0_i32_0 = arith.constant 0 : i32
    return %c0_i32, %arg1 : i32, i32
  }
  func.func @transform_4(%arg0: i32, %arg1: i32) -> (i32, i32) {
    %c0_i32 = arith.constant 0 : i32
    %c0_i32_0 = arith.constant 0 : i32
    return %c0_i32, %arg1 : i32, i32
  }
  func.func @transform_5(%arg0: i32, %arg1: i32) -> (i32, i32) {
    %c0_i32 = arith.constant 0 : i32
    return %arg0, %arg1 : i32, i32
  }
}

</mosaic_0001>

<llo_original>
// kernel: projection_layer_forward.1
$region0: #{projection_layer_forward.1}
  #allocation0 [shape = 'u32[]', space=smem, size = 0x4, offset = 0x4, fixed_abs, tag = 'smem constant byte address 0x4 - core index']
  #allocation1 [shape = 'u32[144,128]{1,0:T(1,128)}', space=vmem, size = 0x12000, scoped, tag = 'internal scratch']
  #allocation2 [shape = 'f32[8,64]{1,0:T(8,128)}', space=vmem, size = 0x1000, scoped, tag = 'scratch operand']
  %s0 = inlined_call_operand.vmem [shape: f32[16,32], index: 0, kind: input, shape index: {}]
  %s1 = inlined_call_operand.vmem [shape: f32[32,64], index: 1, kind: input, shape index: {}]
  %s2 = inlined_call_operand.vmem [shape: f32[1,64], index: 2, kind: input, shape index: {}]
  %s3 = inlined_call_operand.vmem [shape: f32[64,128], index: 3, kind: input, shape index: {}]
  %s4 = inlined_call_operand.vmem [shape: f32[1,128], index: 4, kind: input, shape index: {}]
  %s5 = inlined_call_operand.vmem [shape: f32[16,128], index: 5, kind: output, shape index: {}]
  %s6 = sld [smem:[#allocation0]]
  $region57: #{projection_layer_forward.1} parent=0
    _
  %s8 = ssub.s32 1, %s6
  %s9 = scalar_select 0, %s8, %s6
  loop: start=0, step=1, limit=4
  $region2: #{projection_layer_forward.1} parent=0 // loop_pre_header
    _
  $region3: #{projection_layer_forward.1} parent=0 // loop_header
    %s11 = sphi 0, %s15
    %p12 = scmp.ge.s32.totalorder %s11, 4
    %s18 = sphi 0, %s30
    %s19 = sphi 0, %s26
    %s20 = sphi 0, %s18
    %s21 = sphi 0, %s19
    %s22 = sphi 0, %s20
    %s23 = sphi 0, %s21
    %s33 = sphi 0, %s35
    %s36 = sphi 0, %s33
    %s37 = sphi 0, %s36
    %s53 = sphi 0, %s37
    %s57 = sphi 0, %s57
    %s59 = sphi 0, %s57
    %s60 = sphi 0, %s59
    %s74 = sphi 0, %s60
    %s78 = sphi 0, %s78
    %s80 = sphi 0, %s78
    %s81 = sphi 0, %s80
    %s95 = sphi 0, %s81
    %s101 = sphi 0, %s103
    %s104 = sphi 0, %s101
    %s105 = sphi 0, %s104
    %s121 = sphi 0, %s105
    %s127 = sphi 0, %s129
    %s130 = sphi 0, %s127
    %s131 = sphi 0, %s130
    %s147 = sphi 0, %s131
    %s155 = sphi 0, %s157
    %s158 = sphi 0, %s155
    %s159 = sphi 0, %s158
    %s175 = sphi 0, %s159
  $region4: #{projection_layer_forward.1} parent=0 // loop_header_branch
    %14 = sbr.rel (%p12) target = $region8
  $region5: #{projection_layer_forward.1} parent=0 // loop_body
    %s16 = ssub.s32 %s11, 1
    %s17 = ssub.s32 %s11, 2
    %s24 = sadd.s32 1, %s19
    %p25 = scmp.ge.s32.totalorder %s24, 1
    %s26 = scalar_select %p25, 0, %s24
    %s27 = sadd.s32 1, %s18
    %s28 = scalar_select %p25, %s27, %s18
    %p29 = scmp.ge.s32.totalorder %s28, 2
    %s30 = scalar_select %p29, 0, %s28
    %s31 = ssub.s32 %s18, %s30
    %p32 = scmp.eq.s32.totalorder %s31, 0
    %s34 = sadd.s32 %s33, 1
    %s35 = scalar_select %p32, %s33, %s34
    %p38 = pneg %p32
    %p39 = scmp.eq.s32.totalorder %s11, 1
    %p40 = por %p38, %p39
    %p41 = scmp.ne.s32.totalorder %s33, %s36
    %p42 = scmp.eq.s32.totalorder %s11, 0
    %p43 = por %p41, %p42
    %p44 = scmp.ne.s32.totalorder %s33, %s36
    %p45 = scmp.eq.s32.totalorder %s16, 1
    %p46 = por %p44, %p45
    %p47 = scmp.ne.s32.totalorder %s36, %s37
    %p48 = scmp.eq.s32.totalorder %s16, 0
    %p49 = por %p47, %p48
    %p50 = scmp.ne.s32.totalorder %s36, %s37
    %p51 = scmp.eq.s32.totalorder %s17, 1
    %p52 = por %p50, %p51
    %p54 = scmp.ne.s32.totalorder %s37, %s53
    %p55 = scmp.eq.s32.totalorder %s17, 0
    %p56 = por %p54, %p55
    %s58 = sadd.s32 %s57, 1
    %p61 = scmp.eq.s32.totalorder %s11, 1
    %p62 = scmp.ne.s32.totalorder %s57, %s59
    %p63 = scmp.eq.s32.totalorder %s11, 0
    %p64 = por %p62, %p63
    %p65 = scmp.ne.s32.totalorder %s57, %s59
    %p66 = scmp.eq.s32.totalorder %s16, 1
    %p67 = por %p65, %p66
    %p68 = scmp.ne.s32.totalorder %s59, %s60
    %p69 = scmp.eq.s32.totalorder %s16, 0
    %p70 = por %p68, %p69
    %p71 = scmp.ne.s32.totalorder %s59, %s60
    %p72 = scmp.eq.s32.totalorder %s17, 1
    %p73 = por %p71, %p72
    %p75 = scmp.ne.s32.totalorder %s60, %s74
    %p76 = scmp.eq.s32.totalorder %s17, 0
    %p77 = por %p75, %p76
    %s79 = sadd.s32 %s78, 1
    %p82 = scmp.eq.s32.totalorder %s11, 1
    %p83 = scmp.ne.s32.totalorder %s78, %s80
    %p84 = scmp.eq.s32.totalorder %s11, 0
    %p85 = por %p83, %p84
    %p86 = scmp.ne.s32.totalorder %s78, %s80
    %p87 = scmp.eq.s32.totalorder %s16, 1
    %p88 = por %p86, %p87
    %p89 = scmp.ne.s32.totalorder %s80, %s81
    %p90 = scmp.eq.s32.totalorder %s16, 0
    %p91 = por %p89, %p90
    %p92 = scmp.ne.s32.totalorder %s80, %s81
    %p93 = scmp.eq.s32.totalorder %s17, 1
    %p94 = por %p92, %p93
    %p96 = scmp.ne.s32.totalorder %s81, %s95
    %p97 = scmp.eq.s32.totalorder %s17, 0
    %p98 = por %p96, %p97
    %s99 = ssub.s32 %s19, %s26
    %p100 = scmp.eq.s32.totalorder %s99, 0
    %s102 = sadd.s32 %s101, 1
    %s103 = scalar_select %p100, %s101, %s102
    %p106 = pneg %p100
    %p107 = scmp.eq.s32.totalorder %s11, 1
    %p108 = por %p106, %p107
    %p109 = scmp.ne.s32.totalorder %s101, %s104
    %p110 = scmp.eq.s32.totalorder %s11, 0
    %p111 = por %p109, %p110
    %p112 = scmp.ne.s32.totalorder %s101, %s104
    %p113 = scmp.eq.s32.totalorder %s16, 1
    %p114 = por %p112, %p113
    %p115 = scmp.ne.s32.totalorder %s104, %s105
    %p116 = scmp.eq.s32.totalorder %s16, 0
    %p117 = por %p115, %p116
    %p118 = scmp.ne.s32.totalorder %s104, %s105
    %p119 = scmp.eq.s32.totalorder %s17, 1
    %p120 = por %p118, %p119
    %p122 = scmp.ne.s32.totalorder %s105, %s121
    %p123 = scmp.eq.s32.totalorder %s17, 0
    %p124 = por %p122, %p123
    %s125 = ssub.s32 %s19, %s26
    %p126 = scmp.eq.s32.totalorder %s125, 0
    %s128 = sadd.s32 %s127, 1
    %s129 = scalar_select %p126, %s127, %s128
    %p132 = pneg %p126
    %p133 = scmp.eq.s32.totalorder %s11, 1
    %p134 = por %p132, %p133
    %p135 = scmp.ne.s32.totalorder %s127, %s130
    %p136 = scmp.eq.s32.totalorder %s11, 0
    %p137 = por %p135, %p136
    %p138 = scmp.ne.s32.totalorder %s127, %s130
    %p139 = scmp.eq.s32.totalorder %s16, 1
    %p140 = por %p138, %p139
    %p141 = scmp.ne.s32.totalorder %s130, %s131
    %p142 = scmp.eq.s32.totalorder %s16, 0
    %p143 = por %p141, %p142
    %p144 = scmp.ne.s32.totalorder %s130, %s131
    %p145 = scmp.eq.s32.totalorder %s17, 1
    %p146 = por %p144, %p145
    %p148 = scmp.ne.s32.totalorder %s131, %s147
    %p149 = scmp.eq.s32.totalorder %s17, 0
    %p150 = por %p148, %p149
    %s151 = ssub.s32 %s18, %s30
    %s152 = ssub.s32 %s19, %s26
    %s153 = sor.u32 %s151, %s152
    %p154 = scmp.eq.s32.totalorder %s153, 0
    %s156 = sadd.s32 %s155, 1
    %s157 = scalar_select %p154, %s155, %s156
    %p160 = pneg %p154
    %p161 = scmp.eq.s32.totalorder %s11, 1
    %p162 = por %p160, %p161
    %p163 = scmp.ne.s32.totalorder %s155, %s158
    %p164 = scmp.eq.s32.totalorder %s11, 0
    %p165 = por %p163, %p164
    %p166 = scmp.ne.s32.totalorder %s155, %s158
    %p167 = scmp.eq.s32.totalorder %s16, 1
    %p168 = por %p166, %p167
    %p169 = scmp.ne.s32.totalorder %s158, %s159
    %p170 = scmp.eq.s32.totalorder %s16, 0
    %p171 = por %p169, %p170
    %p172 = scmp.ne.s32.totalorder %s158, %s159
    %p173 = scmp.eq.s32.totalorder %s17, 1
    %p174 = por %p172, %p173
    %p176 = scmp.ne.s32.totalorder %s159, %s175
    %p177 = scmp.eq.s32.totalorder %s17, 0
    %p178 = por %p176, %p177
    %p179 = scmp.le.s32.totalorder 1, %s11
    %p180 = scmp.lt.s32.totalorder %s11, 3
    %p181 = pnand %p179, %p180
    %p182 = pneg %p181
    // Predicated region
    $region9: #{projection_layer_forward.1} parent=5 // pred_check
      _
    $region10: #{projection_layer_forward.1} parent=5 // pred_check_branch
      %184 = sbr.rel (%p181) target = $region12
    $region11: #{projection_layer_forward.1} parent=5 // pred_region
      %s185 = ssub.s32 %s11, 1
      // Predicated region
      $region13: #{projection_layer_forward.1} parent=11 // pred_check
        %p186 = pneg %p70
      $region14: #{projection_layer_forward.1} parent=11 // pred_check_branch
        %188 = sbr.rel (%p186) target = $region16
      $region15: #{projection_layer_forward.1} parent=11 // pred_region
        _
      $region16: #{projection_layer_forward.1} parent=11 // pred_fallthru
        _
      // Predicated region
      $region17: #{projection_layer_forward.1} parent=11 // pred_check
        %p189 = pneg %p91
      $region18: #{projection_layer_forward.1} parent=11 // pred_check_branch
        %191 = sbr.rel (%p189) target = $region20
      $region19: #{projection_layer_forward.1} parent=11 // pred_region
        _
      $region20: #{projection_layer_forward.1} parent=11 // pred_fallthru
        _
      // Predicated region
      $region21: #{projection_layer_forward.1} parent=11 // pred_check
        %p192 = pneg %p117
      $region22: #{projection_layer_forward.1} parent=11 // pred_check_branch
        %194 = sbr.rel (%p192) target = $region24
      $region23: #{projection_layer_forward.1} parent=11 // pred_region
        %p195 = scmp.lt.s32.totalorder %s21, 0
        %s196 = scalar_select %p195, %s21, 0
        %s197 = smul.addr %s196, 8
        %s198 = scalar_lea.vmem %s3, %s197
      $region24: #{projection_layer_forward.1} parent=11 // pred_fallthru
        _
      // Predicated region
      $region25: #{projection_layer_forward.1} parent=11 // pred_check
        %p199 = pneg %p143
      $region26: #{projection_layer_forward.1} parent=11 // pred_check_branch
        %201 = sbr.rel (%p199) target = $region28
      $region27: #{projection_layer_forward.1} parent=11 // pred_region
        %p202 = scmp.lt.s32.totalorder %s21, 0
        %s203 = scalar_select %p202, %s21, 0
        %s204 = scalar_lea.vmem %s4, %s203
      $region28: #{projection_layer_forward.1} parent=11 // pred_fallthru
        _
    $region12: #{projection_layer_forward.1} parent=5 // pred_fallthru
      _
    %p205 = scmp.lt.s32.totalorder %s11, 2
    // Predicated region
    $region29: #{projection_layer_forward.1} parent=5 // pred_check
      %p206 = pneg %p205
    $region30: #{projection_layer_forward.1} parent=5 // pred_check_branch
      %208 = sbr.rel (%p206) target = $region32
    $region31: #{projection_layer_forward.1} parent=5 // pred_region
      // Predicated region
      $region33: #{projection_layer_forward.1} parent=31 // pred_check
        %p209 = pneg %p43
      $region34: #{projection_layer_forward.1} parent=31 // pred_check_branch
        %211 = sbr.rel (%p209) target = $region36
      $region35: #{projection_layer_forward.1} parent=31 // pred_region
        %p212 = scmp.lt.s32.totalorder %s18, 1
        %s213 = scalar_select %p212, %s18, 1
        %s214 = smul.addr %s213, 8
        %s215 = scalar_lea.vmem %s0, %s214
      $region36: #{projection_layer_forward.1} parent=31 // pred_fallthru
        _
    $region32: #{projection_layer_forward.1} parent=5 // pred_fallthru
      _
    %p216 = scmp.le.s32.totalorder 1, %s11
    %p217 = scmp.lt.s32.totalorder %s11, 3
    %p218 = pnand %p216, %p217
    %p219 = pneg %p218
    // Predicated region
    $region37: #{projection_layer_forward.1} parent=5 // pred_check
      _
    $region38: #{projection_layer_forward.1} parent=5 // pred_check_branch
      %221 = sbr.rel (%p218) target = $region40
    $region39: #{projection_layer_forward.1} parent=5 // pred_region
      %s222 = ssub.s32 %s11, 1
      %p223 = scmp.lt.s32.totalorder %s20, 1
      %s224 = scalar_select %p223, %s20, 1
      %s225 = smul.addr %s224, 8
      %s226 = scalar_lea.vmem %s0, %s225
      %p227 = pneg %p49
      %p228 = pneg %p46
      %p229 = pneg %p70
      %p230 = pneg %p67
      %p231 = pneg %p91
      %p232 = pneg %p88
      %p233 = scmp.lt.s32.totalorder %s21, 0
      %s234 = scalar_select %p233, %s21, 0
      %s235 = smul.addr %s234, 8
      %s236 = scalar_lea.vmem %s3, %s235
      %p237 = pneg %p117
      %p238 = pneg %p114
      %p239 = scmp.lt.s32.totalorder %s21, 0
      %s240 = scalar_select %p239, %s21, 0
      %s241 = scalar_lea.vmem %s4, %s240
      %p242 = pneg %p143
      %p243 = pneg %p140
      %p244 = pneg %p171
      %p245 = pneg %p168
      %p246 = scmp.lt.s32.totalorder %s20, 1
      %s247 = scalar_select %p246, %s20, 1
      %p248 = scmp.lt.s32.totalorder %s21, 0
      %s249 = scalar_select %p248, %s21, 0
      %s250 = sadd.s32 %s249, %s247
      %s251 = smul.addr %s250, 8
      %s252 = scalar_lea.vmem %s5, %s251
      %p253 = scmp.lt.s32.totalorder %s20, 1
      %s254 = scalar_select %p253, %s20, 1
      %s255 = smul.addr %s254, 8
      %s256 = scalar_lea.vmem %s0, %s255
      %p257 = scmp.lt.s32.totalorder %s21, 0
      %s258 = scalar_select %p257, %s21, 0
      %s259 = smul.addr %s258, 8
      %s260 = scalar_lea.vmem %s3, %s259
      %p261 = scmp.lt.s32.totalorder %s21, 0
      %s262 = scalar_select %p261, %s21, 0
      %s263 = scalar_lea.vmem %s4, %s262
      %p264 = scmp.lt.s32.totalorder %s20, 1
      %s265 = scalar_select %p264, %s20, 1
      %p266 = scmp.lt.s32.totalorder %s21, 0
      %s267 = scalar_select %p266, %s21, 0
      %s268 = sadd.s32 %s267, %s265
      %s269 = smul.addr %s268, 8
      %s270 = scalar_lea.vmem %s5, %s269
      %p271 = scmp.eq.s32.totalorder %s21, 0
      // Predicated region
      $region41: #{projection_layer_forward.1} parent=39 // pred_check
        %p272 = pneg %p271
      $region42: #{projection_layer_forward.1} parent=39 // pred_check_branch
        %274 = sbr.rel (%p272) target = $region44
      $region43: #{projection_layer_forward.1} parent=39 // pred_region
        %v275 = vld [vmem:[%s256] sm:$0xff]
        %v276 = vld [vmem:[%s1] sm:$0xff]
        %v277 = vld [vmem:[%s1 + $0x8] sm:$0xff]
        %v278 = vld [vmem:[%s1 + $0x10] sm:$0xff]
        %v279 = vld [vmem:[%s1 + $0x18] sm:$0xff]
        %v280 = vld [vmem:[%s2] sm:$0x1]
        %v282 = vlaneseq
        %v283 = vshrl.u32 %v282, 7
        %v284 = vsub.s32 0, %v283
        %v285 = vrot.slane %v280, %v284
        %vm287 = vcmask 261120
        %v289 = vsel %vm287, %v275, 0
        %291 = vmatprep.subr.mxu0 0.0
        %292 = vmatpush1.msra.mxu0 %v276
        %293 = vmatprep.subr.mxu0 0.0
        %294 = vmatpush1.msra.mxu0 %v277
        %295 = vmatprep.subr.mxu0 0.0
        %296 = vmatpush1.msra.mxu0 %v278
        %297 = vmatprep.subr.mxu0 0.0
        %298 = vmatpush1.msra.mxu0 %v279
        %299 = vmatprep.subr.mxu0 0.0
        %300 = vmatpush1.msra.mxu0 0.0
        %301 = vmatprep.subr.mxu0 0.0
        %302 = vmatpush1.msra.mxu0 0.0
        %303 = vmatprep.subr.mxu0 0.0
        %304 = vmatpush1.msra.mxu0 0.0
        %305 = vmatprep.subr.mxu0 0.0
        %306 = vmatpush1.msra.mxu0 0.0
        %307 = vmatprep.subr.mxu0 0.0
        %308 = vmatpush1.msra.mxu0 0.0
        %309 = vmatprep.subr.mxu0 0.0
        %310 = vmatpush1.msra.mxu0 0.0
        %311 = vmatprep.subr.mxu0 0.0
        %312 = vmatpush1.msra.mxu0 0.0
        %313 = vmatprep.subr.mxu0 0.0
        %314 = vmatpush1.msra.mxu0 0.0
        %315 = vmatprep.subr.mxu0 0.0
        %316 = vmatpush1.msra.mxu0 0.0
        %317 = vmatprep.subr.mxu0 0.0
        %318 = vmatpush1.msra.mxu0 0.0
        %319 = vmatprep.subr.mxu0 0.0
        %320 = vmatpush1.msra.mxu0 0.0
        %321 = vmatprep.subr.mxu0 0.0
        %322 = vmatpush1.msra.mxu0 0.0
        %323 = vmatprep.subr.mxu0 0.0
        %324 = vmatpush1.msra.mxu0 0.0
        %325 = vmatprep.subr.mxu0 0.0
        %326 = vmatpush1.msra.mxu0 0.0
        %327 = vmatprep.subr.mxu0 0.0
        %328 = vmatpush1.msra.mxu0 0.0
        %329 = vmatprep.subr.mxu0 0.0
        %330 = vmatpush1.msra.mxu0 0.0
        %331 = vmatprep.subr.mxu0 0.0
        %332 = vmatpush1.msra.mxu0 0.0
        %333 = vmatprep.subr.mxu0 0.0
        %334 = vmatpush1.msra.mxu0 0.0
        %335 = vmatprep.subr.mxu0 0.0
        %336 = vmatpush1.msra.mxu0 0.0
        %337 = vmatprep.subr.mxu0 0.0
        %338 = vmatpush1.msra.mxu0 0.0
        %339 = vmatprep.subr.mxu0 0.0
        %340 = vmatpush1.msra.mxu0 0.0
        %341 = vmatprep.subr.mxu0 0.0
        %342 = vmatpush1.msra.mxu0 0.0
        %343 = vmatprep.subr.mxu0 0.0
        %344 = vmatpush1.msra.mxu0 0.0
        %345 = vmatprep.subr.mxu0 0.0
        %346 = vmatpush1.msra.mxu0 0.0
        %347 = vmatprep.subr.mxu0 0.0
        %348 = vmatpush1.msra.mxu0 0.0
        %349 = vmatprep.subr.mxu0 0.0
        %350 = vmatpush1.msra.mxu0 0.0
        %351 = vmatprep.subr.mxu0 0.0
        %352 = vmatpush1.msra.mxu0 0.0
        %353 = vmatprep.subr.mxu0 0.0
        %354 = vmatpush1.msra.mxu0 0.0
        %355 = vmatprep.mubr.f32.mxu0 0.0
        %356 = vmatmul.mubr.f32.gmra.mrb[0].mxu0 %v289
        %v357 = vpop.f32.mrb[0].mxu0
        %v358 = vadd.f32 %v285, %v357
        %v359 = vpop.f32.mrb[0].mxu0
        %360 = vdwg.mxu0
        %v361 = vmul.f32 %v358, 0.5
        %v362 = vmul.f32 %v358, 0.70710677
        %v363 = verf.f32.pop %v362
        %v364 = vadd.f32 %v363, 1.0
        %v365 = vmul.f32 %v361, %v364
        %vm366 = vcmask 523264
        %367 = vst.msk [vmem:[#allocation2] sm:$0xff] %vm366, %v365
      $region44: #{projection_layer_forward.1} parent=39 // pred_fallthru
        _
      %v368 = vld [vmem:[#allocation2] sm:$0xff]
      %v369 = vld [vmem:[%s260] sm:$0xff]
      %v370 = vld [vmem:[%s260 + $0x8] sm:$0xff]
      %v371 = vld [vmem:[%s260 + $0x10] sm:$0xff]
      %v372 = vld [vmem:[%s260 + $0x18] sm:$0xff]
      %v373 = vld [vmem:[%s260 + $0x20] sm:$0xff]
      %v374 = vld [vmem:[%s260 + $0x28] sm:$0xff]
      %v375 = vld [vmem:[%s260 + $0x30] sm:$0xff]
      %v376 = vld [vmem:[%s260 + $0x38] sm:$0xff]
      %v377 = vld [vmem:[%s263] sm:$0x1]
      %v379 = vlaneseq
      %v380 = vshrl.u32 %v379, 7
      %v381 = vsub.s32 0, %v380
      %v382 = vrot.slane %v377, %v381
      %vm384 = vcmask 523264
      %v386 = vsel %vm384, %v368, 0
      %388 = vmatprep.subr.mxu0 0.0
      %389 = vmatpush1.msra.mxu0 %v369
      %390 = vmatprep.subr.mxu0 0.0
      %391 = vmatpush1.msra.mxu0 %v370
      %392 = vmatprep.subr.mxu0 0.0
      %393 = vmatpush1.msra.mxu0 %v371
      %394 = vmatprep.subr.mxu0 0.0
      %395 = vmatpush1.msra.mxu0 %v372
      %396 = vmatprep.subr.mxu0 0.0
      %397 = vmatpush1.msra.mxu0 %v373
      %398 = vmatprep.subr.mxu0 0.0
      %399 = vmatpush1.msra.mxu0 %v374
      %400 = vmatprep.subr.mxu0 0.0
      %401 = vmatpush1.msra.mxu0 %v375
      %402 = vmatprep.subr.mxu0 0.0
      %403 = vmatpush1.msra.mxu0 %v376
      %404 = vmatprep.subr.mxu0 0.0
      %405 = vmatpush1.msra.mxu0 0.0
      %406 = vmatprep.subr.mxu0 0.0
      %407 = vmatpush1.msra.mxu0 0.0
      %408 = vmatprep.subr.mxu0 0.0
      %409 = vmatpush1.msra.mxu0 0.0
      %410 = vmatprep.subr.mxu0 0.0
      %411 = vmatpush1.msra.mxu0 0.0
      %412 = vmatprep.subr.mxu0 0.0
      %413 = vmatpush1.msra.mxu0 0.0
      %414 = vmatprep.subr.mxu0 0.0
      %415 = vmatpush1.msra.mxu0 0.0
      %416 = vmatprep.subr.mxu0 0.0
      %417 = vmatpush1.msra.mxu0 0.0
      %418 = vmatprep.subr.mxu0 0.0
      %419 = vmatpush1.msra.mxu0 0.0
      %420 = vmatprep.subr.mxu0 0.0
      %421 = vmatpush1.msra.mxu0 0.0
      %422 = vmatprep.subr.mxu0 0.0
      %423 = vmatpush1.msra.mxu0 0.0
      %424 = vmatprep.subr.mxu0 0.0
      %425 = vmatpush1.msra.mxu0 0.0
      %426 = vmatprep.subr.mxu0 0.0
      %427 = vmatpush1.msra.mxu0 0.0
      %428 = vmatprep.subr.mxu0 0.0
      %429 = vmatpush1.msra.mxu0 0.0
      %430 = vmatprep.subr.mxu0 0.0
      %431 = vmatpush1.msra.mxu0 0.0
      %432 = vmatprep.subr.mxu0 0.0
      %433 = vmatpush1.msra.mxu0 0.0
      %434 = vmatprep.subr.mxu0 0.0
      %435 = vmatpush1.msra.mxu0 0.0
      %436 = vmatprep.subr.mxu0 0.0
      %437 = vmatpush1.msra.mxu0 0.0
      %438 = vmatprep.subr.mxu0 0.0
      %439 = vmatpush1.msra.mxu0 0.0
      %440 = vmatprep.subr.mxu0 0.0
      %441 = vmatpush1.msra.mxu0 0.0
      %442 = vmatprep.subr.mxu0 0.0
      %443 = vmatpush1.msra.mxu0 0.0
      %444 = vmatprep.subr.mxu0 0.0
      %445 = vmatpush1.msra.mxu0 0.0
      %446 = vmatprep.subr.mxu0 0.0
      %447 = vmatpush1.msra.mxu0 0.0
      %448 = vmatprep.subr.mxu0 0.0
      %449 = vmatpush1.msra.mxu0 0.0
      %450 = vmatprep.subr.mxu0 0.0
      %451 = vmatpush1.msra.mxu0 0.0
      %452 = vmatprep.mubr.f32.mxu0 0.0
      %453 = vmatmul.mubr.f32.gmra.mrb[0].mxu0 %v386
      %v454 = vpop.f32.mrb[0].mxu0
      %v455 = vadd.f32 %v382, %v454
      %v456 = vpop.f32.mrb[0].mxu0
      %457 = vdwg.mxu0
      %458 = vst [vmem:[%s270] sm:$0xff] %v455
      %p459 = scmp.lt.s32.totalorder %s20, 1
      %s460 = scalar_select %p459, %s20, 1
      %p461 = scmp.lt.s32.totalorder %s21, 0
      %s462 = scalar_select %p461, %s21, 0
      %s463 = sadd.s32 %s462, %s460
      %s464 = smul.addr %s463, 8
      %s465 = scalar_lea.vmem %s5, %s464
      // Predicated region
      $region45: #{projection_layer_forward.1} parent=39 // pred_check
        %p466 = pneg %p168
      $region46: #{projection_layer_forward.1} parent=39 // pred_check_branch
        %468 = sbr.rel (%p466) target = $region48
      $region47: #{projection_layer_forward.1} parent=39 // pred_region
        _
      $region48: #{projection_layer_forward.1} parent=39 // pred_fallthru
        _
    $region40: #{projection_layer_forward.1} parent=5 // pred_fallthru
      _
    %p469 = scmp.le.s32.totalorder 2, %s11
    // Predicated region
    $region49: #{projection_layer_forward.1} parent=5 // pred_check
      %p470 = pneg %p469
    $region50: #{projection_layer_forward.1} parent=5 // pred_check_branch
      %472 = sbr.rel (%p470) target = $region52
    $region51: #{projection_layer_forward.1} parent=5 // pred_region
      %s473 = ssub.s32 %s11, 2
      // Predicated region
      $region53: #{projection_layer_forward.1} parent=51 // pred_check
        %p474 = pneg %p174
      $region54: #{projection_layer_forward.1} parent=51 // pred_check_branch
        %476 = sbr.rel (%p474) target = $region56
      $region55: #{projection_layer_forward.1} parent=51 // pred_region
        %p477 = scmp.lt.s32.totalorder %s22, 1
        %s478 = scalar_select %p477, %s22, 1
        %p479 = scmp.lt.s32.totalorder %s23, 0
        %s480 = scalar_select %p479, %s23, 0
        %s481 = sadd.s32 %s480, %s478
        %s482 = smul.addr %s481, 8
        %s483 = scalar_lea.vmem %s5, %s482
      $region56: #{projection_layer_forward.1} parent=51 // pred_fallthru
        _
    $region52: #{projection_layer_forward.1} parent=5 // pred_fallthru
      _
  $region6: #{projection_layer_forward.1} parent=0 // loop_footer
    %s15 = sadd.s32 1, %s11
  $region7: #{projection_layer_forward.1} parent=0 // loop_footer_branch
    %10 = sbr.rel target = $region3
  $region8: #{projection_layer_forward.1} parent=0 // loop_exit
    _

</llo_original>
